<compile_context>
chip_gen: v7x
topology: tpu7x:2x2x1
jax: 0.10.0
libtpu: 0.0.40
codegen_flags: <defaults>
</compile_context>

<pallas_src>
import functools

import jax
import jax.numpy as jnp
from jax.experimental import pallas as pl
from jax.experimental.pallas import tpu as pltpu


# ---------------------------------------------------------------------------
# Activations in tanh form: one EUP push each instead of exp + reciprocal.
# ---------------------------------------------------------------------------
def _sigmoid_t(x):
    return 0.5 * (1.0 + jnp.tanh(0.5 * x))


def _silu_t(x):
    return 0.5 * x * (1.0 + jnp.tanh(0.5 * x))


# ---------------------------------------------------------------------------
# Kernel
# ---------------------------------------------------------------------------
def scalar_turbulence_kernel(
    x_ref,                    # [C_in, T]   feature-major node tile
    wfirst_ref, bfirst_ref,   # [3H, C_in], [3H, 1]   lin1 | block1 value | block1 gate
    wab2_ref, bab2_ref,       # [2H, H],    [2H, 1]   block2 value | gate
    wro_ref, bro_ref,         # [R, H],     [R, 1]    lin2 folded into readout hidden
    wout_ref, bout_ref,       # [1, R],     [1, 1]    readout output
    out_ref,                  # [1, T]      lane-dense output row
    *, hidden, chunk,
):
    n_chunks = x_ref.shape[1] // chunk

    def compute_chunk(start):
        x = x_ref[:, pl.ds(start, chunk)].astype(jnp.float32)

        # lin1 + block1 value/gate fused into one [3H, C_in] @ [C_in, chunk] matmul.
        z = jnp.dot(wfirst_ref[...], x, preferred_element_type=jnp.float32) + bfirst_ref[...]
        h = z[:hidden, :]
        h = h + _silu_t(z[hidden:2 * hidden, :]) * _sigmoid_t(z[2 * hidden:, :])

        # block2: gated residual, value|gate fused.
        z = jnp.dot(wab2_ref[...], h, preferred_element_type=jnp.float32) + bab2_ref[...]
        h = h + _silu_t(z[:hidden, :]) * _sigmoid_t(z[hidden:, :])

        # lin2 (folded) + readout hidden: H -> 64 -> silu.
        r = _silu_t(jnp.dot(wro_ref[...], h, preferred_element_type=jnp.float32) + bro_ref[...])

        # readout output: 64 -> 1, lane-dense [1, chunk] store.
        out = jnp.dot(wout_ref[...], r, preferred_element_type=jnp.float32) + bout_ref[...]
        out_ref[:, pl.ds(start, chunk)] = out.astype(out_ref.dtype)

    if n_chunks == 1:
        compute_chunk(0)
    else:
        # Chunked inner loop keeps per-chunk h/z/r inside the vreg file
        # (bounds live ranges -> no VMEM spill reload traffic).
        @pl.loop(0, n_chunks)
        def _(c):
            compute_chunk(pl.multiple_of(c * chunk, 128))


# ---------------------------------------------------------------------------
# Parameters
# ---------------------------------------------------------------------------
def init_params(key, c_in=4, hidden=32, readout_mid=64, c_out=1, dtype=jnp.float32):
    """Deterministic synthetic parameter init (shapes follow the module)."""
    ks = jax.random.split(key, 9)

    def dense(k, fan_in, fan_out):
        w = jax.random.normal(k, (fan_in, fan_out), dtype) * (1.0 / jnp.sqrt(fan_in))
        b = jnp.zeros((1, fan_out), dtype)
        return w, b

    w1, b1 = dense(ks[0], c_in, hidden)
    wa1, ba1 = dense(ks[1], hidden, hidden)
    wb1, bb1 = dense(ks[2], hidden, hidden)
    wa2, ba2 = dense(ks[3], hidden, hidden)
    wb2, bb2 = dense(ks[4], hidden, hidden)
    w2, b2 = dense(ks[5], hidden, hidden)
    wr1, br1 = dense(ks[6], hidden, readout_mid)
    wr2, br2 = dense(ks[7], readout_mid, c_out)
    return dict(
        w1=w1, b1=b1,
        wa1=wa1, ba1=ba1, wb1=wb1, bb1=bb1,
        wa2=wa2, ba2=ba2, wb2=wb2, bb2=bb2,
        w2=w2, b2=b2,
        wr1=wr1, br1=br1, wr2=wr2, br2=br2,
    )


def _pack_params(p):
    """Transpose to feature-major and apply exact wrapper-side fusions."""
    f32 = jnp.float32
    w1t = p["w1"].T.astype(f32)                                               # [H, C_in]
    b1t = p["b1"].reshape(-1, 1).astype(f32)                                  # [H, 1]
    wab1t = jnp.concatenate([p["wa1"], p["wb1"]], axis=1).T.astype(f32)       # [2H, H]
    bab1t = jnp.concatenate([p["ba1"], p["bb1"]], axis=1).reshape(-1, 1).astype(f32)

    # Fold lin1 into block1's value|gate matmul and stack with lin1 itself:
    #   z1 = Wab1t (W1t x + b1t) + bab1t = (Wab1t W1t) x + (Wab1t b1t + bab1t)
    wfirst = jnp.concatenate([w1t, wab1t @ w1t], axis=0)                      # [3H, C_in]
    bfirst = jnp.concatenate([b1t, wab1t @ b1t + bab1t], axis=0)              # [3H, 1]

    wab2t = jnp.concatenate([p["wa2"], p["wb2"]], axis=1).T.astype(f32)       # [2H, H]
    bab2t = jnp.concatenate([p["ba2"], p["bb2"]], axis=1).reshape(-1, 1).astype(f32)

    # lin2 folded into the readout's first linear (no nonlinearity in between):
    #   silu((h W2 + b2) Wr1 + br1) = silu(h (W2 Wr1) + (b2 Wr1 + br1))
    w_ro = p["w2"] @ p["wr1"]                                                 # [H, R]
    b_ro = p["b2"] @ p["wr1"] + p["br1"]                                      # [1, R]
    wrot = w_ro.T.astype(f32)                                                 # [R, H]
    brot = b_ro.reshape(-1, 1).astype(f32)                                    # [R, 1]
    woutt = p["wr2"].T.astype(f32)                                            # [1, R]
    boutt = p["br2"].reshape(-1, 1).astype(f32)                               # [1, 1]
    return [wfirst, bfirst, wab2t, bab2t, wrot, brot, woutt, boutt]


# ---------------------------------------------------------------------------
# Tiling helpers
# ---------------------------------------------------------------------------
def _round_up(x, m):
    return (x + m - 1) // m * m


def _num_tensorcores():
    """TensorCores per chip: 2 on megacore chips (v7x/v4/v5p), 1 on v5e/v6e."""
    try:
        info = pltpu.get_tpu_info()
        for attr in ("num_cores", "num_tensorcores", "tensorcores_per_chip", "cores_per_chip"):
            v = getattr(info, attr, None)
            if isinstance(v, int) and v > 0:
                return v
    except Exception:
        pass
    try:
        kind = jax.devices()[0].device_kind.lower()
        if any(t in kind for t in ("v7", "7x", "v4", "v5p")):
            return 2
    except Exception:
        pass
    return 1


def _pick_tile(n, requested, num_cores):
    """Node-tile size (multiple of 128).  Single largest tile on 1-TC chips;
    on multi-TC chips cap the tile so the 'parallel' grid has >= num_cores
    balanced steps (megacore sharding)."""
    n128 = _round_up(max(n, 1), 128)
    tile = min(_round_up(max(requested, 128), 128), n128)
    if num_cores >= 2 and n128 >= num_cores * 128:
        balanced = _round_up(pl.cdiv(n128, num_cores), 128)
        tile = min(tile, balanced)
    return tile


def _pick_chunk(tile):
    for c in (512, 256, 128):
        if tile % c == 0:
            return c
    return tile


# ---------------------------------------------------------------------------
# Wrapper
# ---------------------------------------------------------------------------
@functools.partial(jax.jit, static_argnames=("tile_n", "feature_major"))
def scalar_turbulence_nn(x, params, tile_n=8192, feature_major=False):
    """Forward pass.  x: [N, C_in] node-major (default) or [C_in, N] if
    feature_major=True (skips the wrapper-side transpose HBM pass)."""
    if feature_major:
        c_in, n = x.shape
        xt = x
    else:
        n, c_in = x.shape
        # TODO(synk): callers that already hold features in [C, N] should pass
        # feature_major=True to drop this extra HBM read+write pass.
        xt = jnp.transpose(x)

    num_cores = _num_tensorcores()
    tile = _pick_tile(n, tile_n, num_cores)
    chunk = _pick_chunk(tile)
    n_pad = _round_up(n, tile)
    if n_pad != n:
        xt = jnp.pad(xt, ((0, 0), (0, n_pad - n)))

    param_args = _pack_params(params)
    hidden = params["w1"].shape[1]

    def full_spec(arr):
        # Whole (small) parameter array resident in VMEM for every grid step.
        return pl.BlockSpec(arr.shape, lambda i: (0, 0))

    in_specs = [pl.BlockSpec((c_in, tile), lambda i: (0, i))]
    in_specs += [full_spec(p) for p in param_args]

    kernel = functools.partial(scalar_turbulence_kernel, hidden=hidden, chunk=chunk)

    out2d = pl.pallas_call(
        kernel,
        out_shape=jax.ShapeDtypeStruct((1, n_pad), x.dtype),
        grid_spec=pltpu.PrefetchScalarGridSpec(
            num_scalar_prefetch=0,
            grid=(n_pad // tile,),
            in_specs=in_specs,
            out_specs=pl.BlockSpec((1, tile), lambda i: (0, i)),
        ),
        compiler_params=pltpu.CompilerParams(
            dimension_semantics=("parallel",),
        ),
    )(xt, *param_args)

    # Back to the module's [N, 1] output layout; drop padded nodes.
    return out2d[0, :n][:, None]


# ---------------------------------------------------------------------------
# Pure-JAX reference with the ORIGINAL (unfused) parameters.
# ---------------------------------------------------------------------------
def _reference(x, p):
    def silu(v):
        return v * jax.nn.sigmoid(v)

    h = x @ p["w1"] + p["b1"]
    v = silu(h @ p["wa1"] + p["ba1"])
    g = jax.nn.sigmoid(h @ p["wb1"] + p["bb1"])
    h = h + v * g
    v = silu(h @ p["wa2"] + p["ba2"])
    g = jax.nn.sigmoid(h @ p["wb2"] + p["bb2"])
    h = h + v * g
    h = h @ p["w2"] + p["b2"]
    r = silu(h @ p["wr1"] + p["br1"])
    return r @ p["wr2"] + p["br2"]


if __name__ == "__main__":
    key = jax.random.PRNGKey(0)
    k_x, k_x2, k_p = jax.random.split(key, 3)

    # irreps_in="4x0e", hidden="32x0e".
    C_IN, HIDDEN = 4, 32
    params = init_params(k_p, c_in=C_IN, hidden=HIDDEN)

    # Case 1: small graph, 300 nodes (not a tile multiple -> exercises padding/trim).
    N1 = 300
    x1 = jax.random.normal(k_x, (N1, C_IN), jnp.float32)
    out1 = scalar_turbulence_nn(x1, params)
    jax.block_until_ready(out1)
    ref1 = _reference(x1, params)
    assert out1.shape == (N1, 1), out1.shape
    assert jnp.allclose(out1, ref1, atol=2e-4, rtol=2e-4)

    # Case 2: larger graph -> exercises the in-kernel chunk loop / multi-step grid.
    N2 = 1600
    x2 = jax.random.normal(k_x2, (N2, C_IN), jnp.float32)
    out2 = scalar_turbulence_nn(x2, params)
    jax.block_until_ready(out2)
    ref2 = _reference(x2, params)
    assert out2.shape == (N2, 1), out2.shape
    assert jnp.allclose(out2, ref2, atol=2e-4, rtol=2e-4)

    print("KERNEL_OK")
</pallas_src>

<mosaic_0001>
module attributes {stable_mosaic.version = 11 : i64} {
  func.func @scalar_turbulence_kernel(%arg0: i32, %arg1: memref<4x384xf32, #tpu.memory_space<vmem>>, %arg2: memref<96x4xf32, #tpu.memory_space<vmem>>, %arg3: memref<96x1xf32, #tpu.memory_space<vmem>>, %arg4: memref<64x32xf32, #tpu.memory_space<vmem>>, %arg5: memref<64x1xf32, #tpu.memory_space<vmem>>, %arg6: memref<64x32xf32, #tpu.memory_space<vmem>>, %arg7: memref<64x1xf32, #tpu.memory_space<vmem>>, %arg8: memref<1x64xf32, #tpu.memory_space<vmem>>, %arg9: memref<1x1xf32, #tpu.memory_space<vmem>>, %arg10: memref<1x384xf32, #tpu.memory_space<vmem>>) attributes {dimension_semantics = [#tpu.dimension_semantics<parallel>], iteration_bounds = array<i64: 1>, scalar_prefetch = 0 : i64, scratch_operands = 0 : i64, tpu.core_type = #tpu.core_type<tc>, window_params = [{transform_indices = @transform_0, window_bounds = array<i64: 4, 384>}, {pipeline_mode = #tpu.pipeline_mode<synchronous>, transform_indices = @transform_1, window_bounds = array<i64: 96, 4>}, {pipeline_mode = #tpu.pipeline_mode<synchronous>, transform_indices = @transform_2, window_bounds = array<i64: 96, 1>}, {pipeline_mode = #tpu.pipeline_mode<synchronous>, transform_indices = @transform_3, window_bounds = array<i64: 64, 32>}, {pipeline_mode = #tpu.pipeline_mode<synchronous>, transform_indices = @transform_4, window_bounds = array<i64: 64, 1>}, {pipeline_mode = #tpu.pipeline_mode<synchronous>, transform_indices = @transform_5, window_bounds = array<i64: 64, 32>}, {pipeline_mode = #tpu.pipeline_mode<synchronous>, transform_indices = @transform_6, window_bounds = array<i64: 64, 1>}, {pipeline_mode = #tpu.pipeline_mode<synchronous>, transform_indices = @transform_7, window_bounds = array<i64: 1, 64>}, {pipeline_mode = #tpu.pipeline_mode<synchronous>, transform_indices = @transform_8, window_bounds = array<i64: 1, 1>}, {transform_indices = @transform_9, window_bounds = array<i64: 1, 384>}]} {
    %c0_i32 = arith.constant 0 : i32
    %c3_i32 = arith.constant 3 : i32
    %0 = arith.addi %c0_i32, %c3_i32 : i32
    %c1_i32 = arith.constant 1 : i32
    scf.for %arg11 = %c0_i32 to %0 step %c1_i32  : i32 {
      %c1_i32_1 = arith.constant 1 : i32
      %1 = arith.muli %arg11, %c1_i32_1 : i32
      %c0_i32_2 = arith.constant 0 : i32
      %2 = arith.addi %c0_i32_2, %1 : i32
      %c128_i32 = arith.constant 128 : i32
      %3 = arith.muli %2, %c128_i32 : i32
      %4 = tpu.assume_multiple %3, 128 : i32
      %c0 = arith.constant 0 : index
      %5 = arith.index_cast %4 : i32 to index
      %6 = vector.load %arg1[%c0, %5] : memref<4x384xf32, #tpu.memory_space<vmem>>, vector<4x128xf32>
      %c0_3 = arith.constant 0 : index
      %c0_4 = arith.constant 0 : index
      %7 = vector.load %arg2[%c0_3, %c0_4] : memref<96x4xf32, #tpu.memory_space<vmem>>, vector<96x4xf32>
      %cst = arith.constant dense<0.000000e+00> : vector<96x128xf32>
      %8 = tpu.matmul %7, %6, %cst {dimension_numbers = #tpu.dot_dimension_numbers<[1], [0], [0], [1], [0, 0, 1, 1], [], []>} : vector<96x4xf32>, vector<4x128xf32>, vector<96x128xf32> -> vector<96x128xf32>
      %c0_5 = arith.constant 0 : index
      %c0_6 = arith.constant 0 : index
      %9 = vector.load %arg3[%c0_5, %c0_6] : memref<96x1xf32, #tpu.memory_space<vmem>>, vector<96x1xf32>
      %10 = vector.broadcast %9 : vector<96x1xf32> to vector<96x128xf32>
      %11 = arith.addf %8, %10 : vector<96x128xf32>
      %12 = vector.extract_strided_slice %11 {offsets = [0, 0], sizes = [32, 128], strides = [1, 1]} : vector<96x128xf32> to vector<32x128xf32>
      %13 = vector.extract_strided_slice %11 {offsets = [32, 0], sizes = [32, 128], strides = [1, 1]} : vector<96x128xf32> to vector<32x128xf32>
      %cst_7 = arith.constant 5.000000e-01 : f32
      %14 = vector.broadcast %cst_7 : f32 to vector<32x128xf32>
      %15 = arith.mulf %14, %13 : vector<32x128xf32>
      %cst_8 = arith.constant 5.000000e-01 : f32
      %16 = vector.broadcast %cst_8 : f32 to vector<32x128xf32>
      %17 = arith.mulf %16, %13 : vector<32x128xf32>
      %18 = math.tanh %17 : vector<32x128xf32>
      %cst_9 = arith.constant 1.000000e+00 : f32
      %19 = vector.broadcast %cst_9 : f32 to vector<32x128xf32>
      %20 = arith.addf %19, %18 : vector<32x128xf32>
      %21 = arith.mulf %15, %20 : vector<32x128xf32>
      %22 = vector.extract_strided_slice %11 {offsets = [64, 0], sizes = [32, 128], strides = [1, 1]} : vector<96x128xf32> to vector<32x128xf32>
      %cst_10 = arith.constant 5.000000e-01 : f32
      %23 = vector.broadcast %cst_10 : f32 to vector<32x128xf32>
      %24 = arith.mulf %23, %22 : vector<32x128xf32>
      %25 = math.tanh %24 : vector<32x128xf32>
      %cst_11 = arith.constant 1.000000e+00 : f32
      %26 = vector.broadcast %cst_11 : f32 to vector<32x128xf32>
      %27 = arith.addf %26, %25 : vector<32x128xf32>
      %cst_12 = arith.constant 5.000000e-01 : f32
      %28 = vector.broadcast %cst_12 : f32 to vector<32x128xf32>
      %29 = arith.mulf %28, %27 : vector<32x128xf32>
      %30 = arith.mulf %21, %29 : vector<32x128xf32>
      %31 = arith.addf %12, %30 : vector<32x128xf32>
      %c0_13 = arith.constant 0 : index
      %c0_14 = arith.constant 0 : index
      %32 = vector.load %arg4[%c0_13, %c0_14] : memref<64x32xf32, #tpu.memory_space<vmem>>, vector<64x32xf32>
      %cst_15 = arith.constant dense<0.000000e+00> : vector<64x128xf32>
      %33 = tpu.matmul %32, %31, %cst_15 {dimension_numbers = #tpu.dot_dimension_numbers<[1], [0], [0], [1], [0, 0, 1, 1], [], []>} : vector<64x32xf32>, vector<32x128xf32>, vector<64x128xf32> -> vector<64x128xf32>
      %c0_16 = arith.constant 0 : index
      %c0_17 = arith.constant 0 : index
      %34 = vector.load %arg5[%c0_16, %c0_17] : memref<64x1xf32, #tpu.memory_space<vmem>>, vector<64x1xf32>
      %35 = vector.broadcast %34 : vector<64x1xf32> to vector<64x128xf32>
      %36 = arith.addf %33, %35 : vector<64x128xf32>
      %37 = vector.extract_strided_slice %36 {offsets = [0, 0], sizes = [32, 128], strides = [1, 1]} : vector<64x128xf32> to vector<32x128xf32>
      %cst_18 = arith.constant 5.000000e-01 : f32
      %38 = vector.broadcast %cst_18 : f32 to vector<32x128xf32>
      %39 = arith.mulf %38, %37 : vector<32x128xf32>
      %cst_19 = arith.constant 5.000000e-01 : f32
      %40 = vector.broadcast %cst_19 : f32 to vector<32x128xf32>
      %41 = arith.mulf %40, %37 : vector<32x128xf32>
      %42 = math.tanh %41 : vector<32x128xf32>
      %cst_20 = arith.constant 1.000000e+00 : f32
      %43 = vector.broadcast %cst_20 : f32 to vector<32x128xf32>
      %44 = arith.addf %43, %42 : vector<32x128xf32>
      %45 = arith.mulf %39, %44 : vector<32x128xf32>
      %46 = vector.extract_strided_slice %36 {offsets = [32, 0], sizes = [32, 128], strides = [1, 1]} : vector<64x128xf32> to vector<32x128xf32>
      %cst_21 = arith.constant 5.000000e-01 : f32
      %47 = vector.broadcast %cst_21 : f32 to vector<32x128xf32>
      %48 = arith.mulf %47, %46 : vector<32x128xf32>
      %49 = math.tanh %48 : vector<32x128xf32>
      %cst_22 = arith.constant 1.000000e+00 : f32
      %50 = vector.broadcast %cst_22 : f32 to vector<32x128xf32>
      %51 = arith.addf %50, %49 : vector<32x128xf32>
      %cst_23 = arith.constant 5.000000e-01 : f32
      %52 = vector.broadcast %cst_23 : f32 to vector<32x128xf32>
      %53 = arith.mulf %52, %51 : vector<32x128xf32>
      %54 = arith.mulf %45, %53 : vector<32x128xf32>
      %55 = arith.addf %31, %54 : vector<32x128xf32>
      %c0_24 = arith.constant 0 : index
      %c0_25 = arith.constant 0 : index
      %56 = vector.load %arg6[%c0_24, %c0_25] : memref<64x32xf32, #tpu.memory_space<vmem>>, vector<64x32xf32>
      %cst_26 = arith.constant dense<0.000000e+00> : vector<64x128xf32>
      %57 = tpu.matmul %56, %55, %cst_26 {dimension_numbers = #tpu.dot_dimension_numbers<[1], [0], [0], [1], [0, 0, 1, 1], [], []>} : vector<64x32xf32>, vector<32x128xf32>, vector<64x128xf32> -> vector<64x128xf32>
      %c0_27 = arith.constant 0 : index
      %c0_28 = arith.constant 0 : index
      %58 = vector.load %arg7[%c0_27, %c0_28] : memref<64x1xf32, #tpu.memory_space<vmem>>, vector<64x1xf32>
      %59 = vector.broadcast %58 : vector<64x1xf32> to vector<64x128xf32>
      %60 = arith.addf %57, %59 : vector<64x128xf32>
      %cst_29 = arith.constant 5.000000e-01 : f32
      %61 = vector.broadcast %cst_29 : f32 to vector<64x128xf32>
      %62 = arith.mulf %61, %60 : vector<64x128xf32>
      %cst_30 = arith.constant 5.000000e-01 : f32
      %63 = vector.broadcast %cst_30 : f32 to vector<64x128xf32>
      %64 = arith.mulf %63, %60 : vector<64x128xf32>
      %65 = math.tanh %64 : vector<64x128xf32>
      %cst_31 = arith.constant 1.000000e+00 : f32
      %66 = vector.broadcast %cst_31 : f32 to vector<64x128xf32>
      %67 = arith.addf %66, %65 : vector<64x128xf32>
      %68 = arith.mulf %62, %67 : vector<64x128xf32>
      %c0_32 = arith.constant 0 : index
      %c0_33 = arith.constant 0 : index
      %69 = vector.load %arg8[%c0_32, %c0_33] : memref<1x64xf32, #tpu.memory_space<vmem>>, vector<1x64xf32>
      %cst_34 = arith.constant dense<0.000000e+00> : vector<1x128xf32>
      %70 = tpu.matmul %69, %68, %cst_34 {dimension_numbers = #tpu.dot_dimension_numbers<[1], [0], [0], [1], [0, 0, 1, 1], [], []>} : vector<1x64xf32>, vector<64x128xf32>, vector<1x128xf32> -> vector<1x128xf32>
      %c0_35 = arith.constant 0 : index
      %c0_36 = arith.constant 0 : index
      %71 = vector.load %arg9[%c0_35, %c0_36] : memref<1x1xf32, #tpu.memory_space<vmem>>, vector<1x1xf32>
      %72 = vector.broadcast %71 : vector<1x1xf32> to vector<1x128xf32>
      %73 = arith.addf %70, %72 : vector<1x128xf32>
      %c0_37 = arith.constant 0 : index
      %74 = arith.index_cast %4 : i32 to index
      %75 = vector.load %arg10[%c0_37, %74] : memref<1x384xf32, #tpu.memory_space<vmem>>, vector<1x128xf32>
      tpu.vector_store %arg10[%c0_37, %74], %73 {strides = array<i32>} : memref<1x384xf32, #tpu.memory_space<vmem>>, vector<1x128xf32>,
    }
    %c3_i32_0 = arith.constant 3 : i32
    return
  }
  func.func @transform_0(%arg0: i32) -> (i32, i32) {
    %c0_i32 = arith.constant 0 : i32
    %c0_i32_0 = arith.constant 0 : i32
    return %c0_i32, %arg0 : i32, i32
  }
  func.func @transform_1(%arg0: i32) -> (i32, i32) {
    %c0_i32 = arith.constant 0 : i32
    %c0_i32_0 = arith.constant 0 : i32
    %c0_i32_1 = arith.constant 0 : i32
    return %c0_i32, %c0_i32_0 : i32, i32
  }
  func.func @transform_2(%arg0: i32) -> (i32, i32) {
    %c0_i32 = arith.constant 0 : i32
    %c0_i32_0 = arith.constant 0 : i32
    %c0_i32_1 = arith.constant 0 : i32
    return %c0_i32, %c0_i32_0 : i32, i32
  }
  func.func @transform_3(%arg0: i32) -> (i32, i32) {
    %c0_i32 = arith.constant 0 : i32
    %c0_i32_0 = arith.constant 0 : i32
    %c0_i32_1 = arith.constant 0 : i32
    return %c0_i32, %c0_i32_0 : i32, i32
  }
  func.func @transform_4(%arg0: i32) -> (i32, i32) {
    %c0_i32 = arith.constant 0 : i32
    %c0_i32_0 = arith.constant 0 : i32
    %c0_i32_1 = arith.constant 0 : i32
    return %c0_i32, %c0_i32_0 : i32, i32
  }
  func.func @transform_5(%arg0: i32) -> (i32, i32) {
    %c0_i32 = arith.constant 0 : i32
    %c0_i32_0 = arith.constant 0 : i32
    %c0_i32_1 = arith.constant 0 : i32
    return %c0_i32, %c0_i32_0 : i32, i32
  }
  func.func @transform_6(%arg0: i32) -> (i32, i32) {
    %c0_i32 = arith.constant 0 : i32
    %c0_i32_0 = arith.constant 0 : i32
    %c0_i32_1 = arith.constant 0 : i32
    return %c0_i32, %c0_i32_0 : i32, i32
  }
  func.func @transform_7(%arg0: i32) -> (i32, i32) {
    %c0_i32 = arith.constant 0 : i32
    %c0_i32_0 = arith.constant 0 : i32
    %c0_i32_1 = arith.constant 0 : i32
    return %c0_i32, %c0_i32_0 : i32, i32
  }
  func.func @transform_8(%arg0: i32) -> (i32, i32) {
    %c0_i32 = arith.constant 0 : i32
    %c0_i32_0 = arith.constant 0 : i32
    %c0_i32_1 = arith.constant 0 : i32
    return %c0_i32, %c0_i32_0 : i32, i32
  }
  func.func @transform_9(%arg0: i32) -> (i32, i32) {
    %c0_i32 = arith.constant 0 : i32
    %c0_i32_0 = arith.constant 0 : i32
    return %c0_i32, %arg0 : i32, i32
  }
}

</mosaic_0001>

<llo_original>
// kernel: scalar_turbulence_nn.1
$region0: #{scalar_turbulence_nn.1}
  #allocation0 [shape = 'u32[]', space=smem, size = 0x4, offset = 0x4, fixed_abs, tag = 'smem constant byte address 0x4 - core index']
  #allocation1 [shape = 'u32[144,128]{1,0:T(1,128)}', space=vmem, size = 0x12000, scoped, tag = 'internal scratch']
  #allocation2 [shape = 'f32[1,1]{1,0:T(1,128)S(1)}', space=vmem, size = 0x200, scoped, tag = 'scoped memory for scalar_turbulence_nn.1']
  %s0 = inlined_call_operand.vmem [shape: f32[4,384], index: 0, kind: input, shape index: {}]
  %s1 = inlined_call_operand.vmem [shape: f32[96,4], index: 1, kind: input, shape index: {}]
  %s2 = inlined_call_operand.vmem [shape: f32[96,1], index: 2, kind: input, shape index: {}]
  %s3 = inlined_call_operand.vmem [shape: f32[64,32], index: 3, kind: input, shape index: {}]
  %s4 = inlined_call_operand.vmem [shape: f32[64,1], index: 4, kind: input, shape index: {}]
  %s5 = inlined_call_operand.vmem [shape: f32[64,32], index: 5, kind: input, shape index: {}]
  %s6 = inlined_call_operand.vmem [shape: f32[64,1], index: 6, kind: input, shape index: {}]
  %s7 = inlined_call_operand.vmem [shape: f32[1,64], index: 7, kind: input, shape index: {}]
  %s8 = inlined_call_operand.<no memory space> [shape: f32[1,1], index: 8, kind: input, shape index: {}]
  %s9 = inlined_call_operand.vmem [shape: f32[1,384], index: 9, kind: output, shape index: {}]
  %s10 = sld [smem:[#allocation0]]
  $region53: #{scalar_turbulence_nn.1} parent=0
    _
  %s12 = ssub.s32 1, %s10
  %s13 = scalar_select 0, %s12, %s10
  %v14 = vstv %s8
  %15 = vst [vmem:[#allocation2] sm:$0x1] %v14
  // Predicated region
  $region2: #{scalar_turbulence_nn.1} parent=0 // pred_check
    _
  $region3: #{scalar_turbulence_nn.1} parent=0 // pred_check_branch
    %17 = sbr.rel (0) target = $region5
  $region4: #{scalar_turbulence_nn.1} parent=0 // pred_region
    _
  $region5: #{scalar_turbulence_nn.1} parent=0 // pred_fallthru
    _
  // Predicated region
  $region6: #{scalar_turbulence_nn.1} parent=0 // pred_check
    _
  $region7: #{scalar_turbulence_nn.1} parent=0 // pred_check_branch
    %19 = sbr.rel (0) target = $region9
  $region8: #{scalar_turbulence_nn.1} parent=0 // pred_region
    _
  $region9: #{scalar_turbulence_nn.1} parent=0 // pred_fallthru
    _
  // Predicated region
  $region10: #{scalar_turbulence_nn.1} parent=0 // pred_check
    _
  $region11: #{scalar_turbulence_nn.1} parent=0 // pred_check_branch
    %21 = sbr.rel (0) target = $region13
  $region12: #{scalar_turbulence_nn.1} parent=0 // pred_region
    _
  $region13: #{scalar_turbulence_nn.1} parent=0 // pred_fallthru
    _
  // Predicated region
  $region14: #{scalar_turbulence_nn.1} parent=0 // pred_check
    _
  $region15: #{scalar_turbulence_nn.1} parent=0 // pred_check_branch
    %23 = sbr.rel (0) target = $region17
  $region16: #{scalar_turbulence_nn.1} parent=0 // pred_region
    _
  $region17: #{scalar_turbulence_nn.1} parent=0 // pred_fallthru
    _
  // Predicated region
  $region18: #{scalar_turbulence_nn.1} parent=0 // pred_check
    _
  $region19: #{scalar_turbulence_nn.1} parent=0 // pred_check_branch
    %25 = sbr.rel (0) target = $region21
  $region20: #{scalar_turbulence_nn.1} parent=0 // pred_region
    _
  $region21: #{scalar_turbulence_nn.1} parent=0 // pred_fallthru
    _
  // Predicated region
  $region22: #{scalar_turbulence_nn.1} parent=0 // pred_check
    _
  $region23: #{scalar_turbulence_nn.1} parent=0 // pred_check_branch
    %27 = sbr.rel (0) target = $region25
  $region24: #{scalar_turbulence_nn.1} parent=0 // pred_region
    _
  $region25: #{scalar_turbulence_nn.1} parent=0 // pred_fallthru
    _
  // Predicated region
  $region26: #{scalar_turbulence_nn.1} parent=0 // pred_check
    _
  $region27: #{scalar_turbulence_nn.1} parent=0 // pred_check_branch
    %29 = sbr.rel (0) target = $region29
  $region28: #{scalar_turbulence_nn.1} parent=0 // pred_region
    _
  $region29: #{scalar_turbulence_nn.1} parent=0 // pred_fallthru
    _
  // Predicated region
  $region30: #{scalar_turbulence_nn.1} parent=0 // pred_check
    _
  $region31: #{scalar_turbulence_nn.1} parent=0 // pred_check_branch
    %31 = sbr.rel (0) target = $region33
  $region32: #{scalar_turbulence_nn.1} parent=0 // pred_region
    _
  $region33: #{scalar_turbulence_nn.1} parent=0 // pred_fallthru
    _
  // Predicated region
  $region34: #{scalar_turbulence_nn.1} parent=0 // pred_check
    _
  $region35: #{scalar_turbulence_nn.1} parent=0 // pred_check_branch
    %33 = sbr.rel (0) target = $region37
  $region36: #{scalar_turbulence_nn.1} parent=0 // pred_region
    _
  $region37: #{scalar_turbulence_nn.1} parent=0 // pred_fallthru
    _
  loop: start=0, step=1, limit=3
  $region38: #{scalar_turbulence_nn.1} parent=0 // loop_pre_header
    _
  $region39: #{scalar_turbulence_nn.1} parent=0 // loop_header
    %s35 = sphi 0, %s39
    %p36 = scmp.ge.s32.totalorder %s35, 3
  $region40: #{scalar_turbulence_nn.1} parent=0 // loop_header_branch
    %38 = sbr.rel (%p36) target = $region44
  $region41: #{scalar_turbulence_nn.1} parent=0 // loop_body
    %s40 = smul.u32 %s35, 128
    %s41 = sshra.s32 %s40, 7
    %s42 = sand.u32 %s40, 127
    %s43 = smul.addr %s41, 4
    %s44 = scalar_lea.vmem %s0, %s43
    %v45 = vld [vmem:[%s44] sm:$0xf]
    %v46 = vld [vmem:[%s1] sm:$0xff]
    %v47 = vld [vmem:[%s1 + $0x8] sm:$0xff]
    %v48 = vld [vmem:[%s1 + $0x10] sm:$0xff]
    %v49 = vld [vmem:[%s1 + $0x18] sm:$0xff]
    %v50 = vld [vmem:[%s1 + $0x20] sm:$0xff]
    %v51 = vld [vmem:[%s1 + $0x28] sm:$0xff]
    %v52 = vld [vmem:[%s1 + $0x30] sm:$0xff]
    %v53 = vld [vmem:[%s1 + $0x38] sm:$0xff]
    %v54 = vld [vmem:[%s1 + $0x40] sm:$0xff]
    %v55 = vld [vmem:[%s1 + $0x48] sm:$0xff]
    %v56 = vld [vmem:[%s1 + $0x50] sm:$0xff]
    %v57 = vld [vmem:[%s1 + $0x58] sm:$0xff]
    %v58 = vld [vmem:[%s2] sm:$0xff]
    %v59 = vld [vmem:[%s2 + $0x8] sm:$0xff]
    %v60 = vld [vmem:[%s2 + $0x10] sm:$0xff]
    %v61 = vld [vmem:[%s2 + $0x18] sm:$0xff]
    %v62 = vld [vmem:[%s2 + $0x20] sm:$0xff]
    %v63 = vld [vmem:[%s2 + $0x28] sm:$0xff]
    %v64 = vld [vmem:[%s2 + $0x30] sm:$0xff]
    %v65 = vld [vmem:[%s2 + $0x38] sm:$0xff]
    %v66 = vld [vmem:[%s2 + $0x40] sm:$0xff]
    %v67 = vld [vmem:[%s2 + $0x48] sm:$0xff]
    %v68 = vld [vmem:[%s2 + $0x50] sm:$0xff]
    %v69 = vld [vmem:[%s2 + $0x58] sm:$0xff]
    %71 = vset.pattern.permute.xlu0 0
    %72 = vperm.xlu0 %71, %v58
    %v73 = vpop.permute.xlu0 %72
    %76 = vset.pattern.permute.xlu0 0
    %77 = vperm.xlu0 %76, %v59
    %v78 = vpop.permute.xlu0 %77
    %81 = vset.pattern.permute.xlu0 0
    %82 = vperm.xlu0 %81, %v60
    %v83 = vpop.permute.xlu0 %82
    %86 = vset.pattern.permute.xlu0 0
    %87 = vperm.xlu0 %86, %v61
    %v88 = vpop.permute.xlu0 %87
    %91 = vset.pattern.permute.xlu0 0
    %92 = vperm.xlu0 %91, %v62
    %v93 = vpop.permute.xlu0 %92
    %96 = vset.pattern.permute.xlu0 0
    %97 = vperm.xlu0 %96, %v63
    %v98 = vpop.permute.xlu0 %97
    %101 = vset.pattern.permute.xlu0 0
    %102 = vperm.xlu0 %101, %v64
    %v103 = vpop.permute.xlu0 %102
    %106 = vset.pattern.permute.xlu0 0
    %107 = vperm.xlu0 %106, %v65
    %v108 = vpop.permute.xlu0 %107
    %111 = vset.pattern.permute.xlu0 0
    %112 = vperm.xlu0 %111, %v66
    %v113 = vpop.permute.xlu0 %112
    %116 = vset.pattern.permute.xlu0 0
    %117 = vperm.xlu0 %116, %v67
    %v118 = vpop.permute.xlu0 %117
    %121 = vset.pattern.permute.xlu0 0
    %122 = vperm.xlu0 %121, %v68
    %v123 = vpop.permute.xlu0 %122
    %126 = vset.pattern.permute.xlu0 0
    %127 = vperm.xlu0 %126, %v69
    %v128 = vpop.permute.xlu0 %127
    %vm130 = vcmask 31744
    %v132 = vsel %vm130, %v46, 0
    %v135 = vsel %vm130, %v47, 0
    %v138 = vsel %vm130, %v48, 0
    %v141 = vsel %vm130, %v49, 0
    %v144 = vsel %vm130, %v50, 0
    %v147 = vsel %vm130, %v51, 0
    %v150 = vsel %vm130, %v52, 0
    %v153 = vsel %vm130, %v53, 0
    %v156 = vsel %vm130, %v54, 0
    %v159 = vsel %vm130, %v55, 0
    %v162 = vsel %vm130, %v56, 0
    %v165 = vsel %vm130, %v57, 0
    %vm167 = vcmask 1043456
    %v169 = vsel %vm167, %v45, 0
    %171 = vmatprep.subr.mxu0 0.0
    %172 = vmatpush1.msra.mxu0 %v169
    %173 = vmatprep.subr.mxu0 0.0
    %174 = vmatpush1.msra.mxu0 0.0
    %175 = vmatprep.subr.mxu0 0.0
    %176 = vmatpush1.msra.mxu0 0.0
    %177 = vmatprep.subr.mxu0 0.0
    %178 = vmatpush1.msra.mxu0 0.0
    %179 = vmatprep.subr.mxu0 0.0
    %180 = vmatpush1.msra.mxu0 0.0
    %181 = vmatprep.subr.mxu0 0.0
    %182 = vmatpush1.msra.mxu0 0.0
    %183 = vmatprep.subr.mxu0 0.0
    %184 = vmatpush1.msra.mxu0 0.0
    %185 = vmatprep.subr.mxu0 0.0
    %186 = vmatpush1.msra.mxu0 0.0
    %187 = vmatprep.subr.mxu0 0.0
    %188 = vmatpush1.msra.mxu0 0.0
    %189 = vmatprep.subr.mxu0 0.0
    %190 = vmatpush1.msra.mxu0 0.0
    %191 = vmatprep.subr.mxu0 0.0
    %192 = vmatpush1.msra.mxu0 0.0
    %193 = vmatprep.subr.mxu0 0.0
    %194 = vmatpush1.msra.mxu0 0.0
    %195 = vmatprep.subr.mxu0 0.0
    %196 = vmatpush1.msra.mxu0 0.0
    %197 = vmatprep.subr.mxu0 0.0
    %198 = vmatpush1.msra.mxu0 0.0
    %199 = vmatprep.subr.mxu0 0.0
    %200 = vmatpush1.msra.mxu0 0.0
    %201 = vmatprep.subr.mxu0 0.0
    %202 = vmatpush1.msra.mxu0 0.0
    %203 = vmatprep.subr.mxu0 0.0
    %204 = vmatpush1.msra.mxu0 0.0
    %205 = vmatprep.subr.mxu0 0.0
    %206 = vmatpush1.msra.mxu0 0.0
    %207 = vmatprep.subr.mxu0 0.0
    %208 = vmatpush1.msra.mxu0 0.0
    %209 = vmatprep.subr.mxu0 0.0
    %210 = vmatpush1.msra.mxu0 0.0
    %211 = vmatprep.subr.mxu0 0.0
    %212 = vmatpush1.msra.mxu0 0.0
    %213 = vmatprep.subr.mxu0 0.0
    %214 = vmatpush1.msra.mxu0 0.0
    %215 = vmatprep.subr.mxu0 0.0
    %216 = vmatpush1.msra.mxu0 0.0
    %217 = vmatprep.subr.mxu0 0.0
    %218 = vmatpush1.msra.mxu0 0.0
    %219 = vmatprep.subr.mxu0 0.0
    %220 = vmatpush1.msra.mxu0 0.0
    %221 = vmatprep.subr.mxu0 0.0
    %222 = vmatpush1.msra.mxu0 0.0
    %223 = vmatprep.subr.mxu0 0.0
    %224 = vmatpush1.msra.mxu0 0.0
    %225 = vmatprep.subr.mxu0 0.0
    %226 = vmatpush1.msra.mxu0 0.0
    %227 = vmatprep.subr.mxu0 0.0
    %228 = vmatpush1.msra.mxu0 0.0
    %229 = vmatprep.subr.mxu0 0.0
    %230 = vmatpush1.msra.mxu0 0.0
    %231 = vmatprep.subr.mxu0 0.0
    %232 = vmatpush1.msra.mxu0 0.0
    %233 = vmatprep.subr.mxu0 0.0
    %234 = vmatpush1.msra.mxu0 0.0
    %235 = vmatprep.mubr.f32.mxu0 0.0
    %236 = vmatmul.mubr.f32.gmra.mrb[0].mxu0 %v132
    %v237 = vpop.f32.mrb[0].mxu0
    %v238 = vadd.f32 %v73, %v237
    %v239 = vpop.f32.mrb[0].mxu0
    %240 = vmatprep.mubr.f32.mxu0 0.0
    %241 = vmatmul.mubr.f32.gmra.mrb[0].mxu0 %v135
    %v242 = vpop.f32.mrb[0].mxu0
    %v243 = vadd.f32 %v78, %v242
    %v244 = vpop.f32.mrb[0].mxu0
    %245 = vmatprep.mubr.f32.mxu0 0.0
    %246 = vmatmul.mubr.f32.gmra.mrb[0].mxu0 %v138
    %v247 = vpop.f32.mrb[0].mxu0
    %v248 = vadd.f32 %v83, %v247
    %v249 = vpop.f32.mrb[0].mxu0
    %250 = vmatprep.mubr.f32.mxu0 0.0
    %251 = vmatmul.mubr.f32.gmra.mrb[0].mxu0 %v141
    %v252 = vpop.f32.mrb[0].mxu0
    %v253 = vadd.f32 %v88, %v252
    %v254 = vpop.f32.mrb[0].mxu0
    %255 = vmatprep.mubr.f32.mxu0 0.0
    %256 = vmatmul.mubr.f32.gmra.mrb[0].mxu0 %v144
    %v257 = vpop.f32.mrb[0].mxu0
    %v258 = vadd.f32 %v93, %v257
    %v259 = vpop.f32.mrb[0].mxu0
    %260 = vmatprep.mubr.f32.mxu0 0.0
    %261 = vmatmul.mubr.f32.gmra.mrb[0].mxu0 %v147
    %v262 = vpop.f32.mrb[0].mxu0
    %v263 = vadd.f32 %v98, %v262
    %v264 = vpop.f32.mrb[0].mxu0
    %265 = vmatprep.mubr.f32.mxu0 0.0
    %266 = vmatmul.mubr.f32.gmra.mrb[0].mxu0 %v150
    %v267 = vpop.f32.mrb[0].mxu0
    %v268 = vadd.f32 %v103, %v267
    %v269 = vpop.f32.mrb[0].mxu0
    %270 = vmatprep.mubr.f32.mxu0 0.0
    %271 = vmatmul.mubr.f32.gmra.mrb[0].mxu0 %v153
    %v272 = vpop.f32.mrb[0].mxu0
    %v273 = vadd.f32 %v108, %v272
    %v274 = vpop.f32.mrb[0].mxu0
    %275 = vmatprep.mubr.f32.mxu0 0.0
    %276 = vmatmul.mubr.f32.gmra.mrb[0].mxu0 %v156
    %v277 = vpop.f32.mrb[0].mxu0
    %v278 = vadd.f32 %v113, %v277
    %v279 = vpop.f32.mrb[0].mxu0
    %280 = vmatprep.mubr.f32.mxu0 0.0
    %281 = vmatmul.mubr.f32.gmra.mrb[0].mxu0 %v159
    %v282 = vpop.f32.mrb[0].mxu0
    %v283 = vadd.f32 %v118, %v282
    %v284 = vpop.f32.mrb[0].mxu0
    %285 = vmatprep.mubr.f32.mxu0 0.0
    %286 = vmatmul.mubr.f32.gmra.mrb[0].mxu0 %v162
    %v287 = vpop.f32.mrb[0].mxu0
    %v288 = vadd.f32 %v123, %v287
    %v289 = vpop.f32.mrb[0].mxu0
    %290 = vmatprep.mubr.f32.mxu0 0.0
    %291 = vmatmul.mubr.f32.gmra.mrb[0].mxu0 %v165
    %v292 = vpop.f32.mrb[0].mxu0
    %v293 = vadd.f32 %v128, %v292
    %v294 = vpop.f32.mrb[0].mxu0
    %295 = vdwg.mxu0
    %v296 = vmul.f32 %v258, 0.5
    %v297 = vmul.f32 %v263, 0.5
    %v298 = vmul.f32 %v268, 0.5
    %v299 = vmul.f32 %v273, 0.5
    %v300 = vtanh.pop %v296
    %v301 = vtanh.pop %v297
    %v302 = vtanh.pop %v298
    %v303 = vtanh.pop %v299
    %v304 = vadd.f32 %v300, 1.0
    %v305 = vadd.f32 %v301, 1.0
    %v306 = vadd.f32 %v302, 1.0
    %v307 = vadd.f32 %v303, 1.0
    %v308 = vmul.f32 %v296, %v304
    %v309 = vmul.f32 %v297, %v305
    %v310 = vmul.f32 %v298, %v306
    %v311 = vmul.f32 %v299, %v307
    %v312 = vmul.f32 %v278, 0.5
    %v313 = vmul.f32 %v283, 0.5
    %v314 = vmul.f32 %v288, 0.5
    %v315 = vmul.f32 %v293, 0.5
    %v316 = vtanh.pop %v312
    %v317 = vtanh.pop %v313
    %v318 = vtanh.pop %v314
    %v319 = vtanh.pop %v315
    %v320 = vadd.f32 %v316, 1.0
    %v321 = vadd.f32 %v317, 1.0
    %v322 = vadd.f32 %v318, 1.0
    %v323 = vadd.f32 %v319, 1.0
    %v324 = vmul.f32 %v320, 0.5
    %v325 = vmul.f32 %v321, 0.5
    %v326 = vmul.f32 %v322, 0.5
    %v327 = vmul.f32 %v323, 0.5
    %v328 = vmul.f32 %v308, %v324
    %v329 = vmul.f32 %v309, %v325
    %v330 = vmul.f32 %v310, %v326
    %v331 = vmul.f32 %v311, %v327
    %v332 = vadd.f32 %v238, %v328
    %v333 = vadd.f32 %v243, %v329
    %v334 = vadd.f32 %v248, %v330
    %v335 = vadd.f32 %v253, %v331
    %v336 = vld [vmem:[%s3] sm:$0xff]
    %v337 = vld [vmem:[%s3 + $0x8] sm:$0xff]
    %v338 = vld [vmem:[%s3 + $0x10] sm:$0xff]
    %v339 = vld [vmem:[%s3 + $0x18] sm:$0xff]
    %v340 = vld [vmem:[%s3 + $0x20] sm:$0xff]
    %v341 = vld [vmem:[%s3 + $0x28] sm:$0xff]
    %v342 = vld [vmem:[%s3 + $0x30] sm:$0xff]
    %v343 = vld [vmem:[%s3 + $0x38] sm:$0xff]
    %v344 = vld [vmem:[%s4] sm:$0xff]
    %v345 = vld [vmem:[%s4 + $0x8] sm:$0xff]
    %v346 = vld [vmem:[%s4 + $0x10] sm:$0xff]
    %v347 = vld [vmem:[%s4 + $0x18] sm:$0xff]
    %v348 = vld [vmem:[%s4 + $0x20] sm:$0xff]
    %v349 = vld [vmem:[%s4 + $0x28] sm:$0xff]
    %v350 = vld [vmem:[%s4 + $0x30] sm:$0xff]
    %v351 = vld [vmem:[%s4 + $0x38] sm:$0xff]
    %353 = vset.pattern.permute.xlu0 0
    %354 = vperm.xlu0 %353, %v344
    %v355 = vpop.permute.xlu0 %354
    %358 = vset.pattern.permute.xlu0 0
    %359 = vperm.xlu0 %358, %v345
    %v360 = vpop.permute.xlu0 %359
    %363 = vset.pattern.permute.xlu0 0
    %364 = vperm.xlu0 %363, %v346
    %v365 = vpop.permute.xlu0 %364
    %368 = vset.pattern.permute.xlu0 0
    %369 = vperm.xlu0 %368, %v347
    %v370 = vpop.permute.xlu0 %369
    %373 = vset.pattern.permute.xlu0 0
    %374 = vperm.xlu0 %373, %v348
    %v375 = vpop.permute.xlu0 %374
    %378 = vset.pattern.permute.xlu0 0
    %379 = vperm.xlu0 %378, %v349
    %v380 = vpop.permute.xlu0 %379
    %383 = vset.pattern.permute.xlu0 0
    %384 = vperm.xlu0 %383, %v350
    %v385 = vpop.permute.xlu0 %384
    %388 = vset.pattern.permute.xlu0 0
    %389 = vperm.xlu0 %388, %v351
    %v390 = vpop.permute.xlu0 %389
    %vm392 = vcmask 261120
    %v394 = vsel %vm392, %v336, 0
    %v397 = vsel %vm392, %v337, 0
    %v400 = vsel %vm392, %v338, 0
    %v403 = vsel %vm392, %v339, 0
    %v406 = vsel %vm392, %v340, 0
    %v409 = vsel %vm392, %v341, 0
    %v412 = vsel %vm392, %v342, 0
    %v415 = vsel %vm392, %v343, 0
    %417 = vmatprep.subr.mxu0 0.0
    %418 = vmatpush1.msra.mxu0 %v332
    %419 = vmatprep.subr.mxu0 0.0
    %420 = vmatpush1.msra.mxu0 %v333
    %421 = vmatprep.subr.mxu0 0.0
    %422 = vmatpush1.msra.mxu0 %v334
    %423 = vmatprep.subr.mxu0 0.0
    %424 = vmatpush1.msra.mxu0 %v335
    %425 = vmatprep.subr.mxu0 0.0
    %426 = vmatpush1.msra.mxu0 0.0
    %427 = vmatprep.subr.mxu0 0.0
    %428 = vmatpush1.msra.mxu0 0.0
    %429 = vmatprep.subr.mxu0 0.0
    %430 = vmatpush1.msra.mxu0 0.0
    %431 = vmatprep.subr.mxu0 0.0
    %432 = vmatpush1.msra.mxu0 0.0
    %433 = vmatprep.subr.mxu0 0.0
    %434 = vmatpush1.msra.mxu0 0.0
    %435 = vmatprep.subr.mxu0 0.0
    %436 = vmatpush1.msra.mxu0 0.0
    %437 = vmatprep.subr.mxu0 0.0
    %438 = vmatpush1.msra.mxu0 0.0
    %439 = vmatprep.subr.mxu0 0.0
    %440 = vmatpush1.msra.mxu0 0.0
    %441 = vmatprep.subr.mxu0 0.0
    %442 = vmatpush1.msra.mxu0 0.0
    %443 = vmatprep.subr.mxu0 0.0
    %444 = vmatpush1.msra.mxu0 0.0
    %445 = vmatprep.subr.mxu0 0.0
    %446 = vmatpush1.msra.mxu0 0.0
    %447 = vmatprep.subr.mxu0 0.0
    %448 = vmatpush1.msra.mxu0 0.0
    %449 = vmatprep.subr.mxu0 0.0
    %450 = vmatpush1.msra.mxu0 0.0
    %451 = vmatprep.subr.mxu0 0.0
    %452 = vmatpush1.msra.mxu0 0.0
    %453 = vmatprep.subr.mxu0 0.0
    %454 = vmatpush1.msra.mxu0 0.0
    %455 = vmatprep.subr.mxu0 0.0
    %456 = vmatpush1.msra.mxu0 0.0
    %457 = vmatprep.subr.mxu0 0.0
    %458 = vmatpush1.msra.mxu0 0.0
    %459 = vmatprep.subr.mxu0 0.0
    %460 = vmatpush1.msra.mxu0 0.0
    %461 = vmatprep.subr.mxu0 0.0
    %462 = vmatpush1.msra.mxu0 0.0
    %463 = vmatprep.subr.mxu0 0.0
    %464 = vmatpush1.msra.mxu0 0.0
    %465 = vmatprep.subr.mxu0 0.0
    %466 = vmatpush1.msra.mxu0 0.0
    %467 = vmatprep.subr.mxu0 0.0
    %468 = vmatpush1.msra.mxu0 0.0
    %469 = vmatprep.subr.mxu0 0.0
    %470 = vmatpush1.msra.mxu0 0.0
    %471 = vmatprep.subr.mxu0 0.0
    %472 = vmatpush1.msra.mxu0 0.0
    %473 = vmatprep.subr.mxu0 0.0
    %474 = vmatpush1.msra.mxu0 0.0
    %475 = vmatprep.subr.mxu0 0.0
    %476 = vmatpush1.msra.mxu0 0.0
    %477 = vmatprep.subr.mxu0 0.0
    %478 = vmatpush1.msra.mxu0 0.0
    %479 = vmatprep.subr.mxu0 0.0
    %480 = vmatpush1.msra.mxu0 0.0
    %481 = vmatprep.mubr.f32.mxu0 0.0
    %482 = vmatmul.mubr.f32.gmra.mrb[0].mxu0 %v394
    %v483 = vpop.f32.mrb[0].mxu0
    %v484 = vadd.f32 %v355, %v483
    %v485 = vpop.f32.mrb[0].mxu0
    %486 = vmatprep.mubr.f32.mxu0 0.0
    %487 = vmatmul.mubr.f32.gmra.mrb[0].mxu0 %v397
    %v488 = vpop.f32.mrb[0].mxu0
    %v489 = vadd.f32 %v360, %v488
    %v490 = vpop.f32.mrb[0].mxu0
    %491 = vmatprep.mubr.f32.mxu0 0.0
    %492 = vmatmul.mubr.f32.gmra.mrb[0].mxu0 %v400
    %v493 = vpop.f32.mrb[0].mxu0
    %v494 = vadd.f32 %v365, %v493
    %v495 = vpop.f32.mrb[0].mxu0
    %496 = vmatprep.mubr.f32.mxu0 0.0
    %497 = vmatmul.mubr.f32.gmra.mrb[0].mxu0 %v403
    %v498 = vpop.f32.mrb[0].mxu0
    %v499 = vadd.f32 %v370, %v498
    %v500 = vpop.f32.mrb[0].mxu0
    %501 = vmatprep.mubr.f32.mxu0 0.0
    %502 = vmatmul.mubr.f32.gmra.mrb[0].mxu0 %v406
    %v503 = vpop.f32.mrb[0].mxu0
    %v504 = vadd.f32 %v375, %v503
    %v505 = vpop.f32.mrb[0].mxu0
    %506 = vmatprep.mubr.f32.mxu0 0.0
    %507 = vmatmul.mubr.f32.gmra.mrb[0].mxu0 %v409
    %v508 = vpop.f32.mrb[0].mxu0
    %v509 = vadd.f32 %v380, %v508
    %v510 = vpop.f32.mrb[0].mxu0
    %511 = vmatprep.mubr.f32.mxu0 0.0
    %512 = vmatmul.mubr.f32.gmra.mrb[0].mxu0 %v412
    %v513 = vpop.f32.mrb[0].mxu0
    %v514 = vadd.f32 %v385, %v513
    %v515 = vpop.f32.mrb[0].mxu0
    %516 = vmatprep.mubr.f32.mxu0 0.0
    %517 = vmatmul.mubr.f32.gmra.mrb[0].mxu0 %v415
    %v518 = vpop.f32.mrb[0].mxu0
    %v519 = vadd.f32 %v390, %v518
    %v520 = vpop.f32.mrb[0].mxu0
    %521 = vdwg.mxu0
    %v522 = vmul.f32 %v484, 0.5
    %v523 = vmul.f32 %v489, 0.5
    %v524 = vmul.f32 %v494, 0.5
    %v525 = vmul.f32 %v499, 0.5
    %v526 = vtanh.pop %v522
    %v527 = vtanh.pop %v523
    %v528 = vtanh.pop %v524
    %v529 = vtanh.pop %v525
    %v530 = vadd.f32 %v526, 1.0
    %v531 = vadd.f32 %v527, 1.0
    %v532 = vadd.f32 %v528, 1.0
    %v533 = vadd.f32 %v529, 1.0
    %v534 = vmul.f32 %v522, %v530
    %v535 = vmul.f32 %v523, %v531
    %v536 = vmul.f32 %v524, %v532
    %v537 = vmul.f32 %v525, %v533
    %v538 = vmul.f32 %v504, 0.5
    %v539 = vmul.f32 %v509, 0.5
    %v540 = vmul.f32 %v514, 0.5
    %v541 = vmul.f32 %v519, 0.5
    %v542 = vtanh.pop %v538
    %v543 = vtanh.pop %v539
    %v544 = vtanh.pop %v540
    %v545 = vtanh.pop %v541
    %v546 = vadd.f32 %v542, 1.0
    %v547 = vadd.f32 %v543, 1.0
    %v548 = vadd.f32 %v544, 1.0
    %v549 = vadd.f32 %v545, 1.0
    %v550 = vmul.f32 %v546, 0.5
    %v551 = vmul.f32 %v547, 0.5
    %v552 = vmul.f32 %v548, 0.5
    %v553 = vmul.f32 %v549, 0.5
    %v554 = vmul.f32 %v534, %v550
    %v555 = vmul.f32 %v535, %v551
    %v556 = vmul.f32 %v536, %v552
    %v557 = vmul.f32 %v537, %v553
    %v558 = vadd.f32 %v332, %v554
    %v559 = vadd.f32 %v333, %v555
    %v560 = vadd.f32 %v334, %v556
    %v561 = vadd.f32 %v335, %v557
    %v562 = vld [vmem:[%s5] sm:$0xff]
    %v563 = vld [vmem:[%s5 + $0x8] sm:$0xff]
    %v564 = vld [vmem:[%s5 + $0x10] sm:$0xff]
    %v565 = vld [vmem:[%s5 + $0x18] sm:$0xff]
    %v566 = vld [vmem:[%s5 + $0x20] sm:$0xff]
    %v567 = vld [vmem:[%s5 + $0x28] sm:$0xff]
    %v568 = vld [vmem:[%s5 + $0x30] sm:$0xff]
    %v569 = vld [vmem:[%s5 + $0x38] sm:$0xff]
    %v570 = vld [vmem:[%s6] sm:$0xff]
    %v571 = vld [vmem:[%s6 + $0x8] sm:$0xff]
    %v572 = vld [vmem:[%s6 + $0x10] sm:$0xff]
    %v573 = vld [vmem:[%s6 + $0x18] sm:$0xff]
    %v574 = vld [vmem:[%s6 + $0x20] sm:$0xff]
    %v575 = vld [vmem:[%s6 + $0x28] sm:$0xff]
    %v576 = vld [vmem:[%s6 + $0x30] sm:$0xff]
    %v577 = vld [vmem:[%s6 + $0x38] sm:$0xff]
    %579 = vset.pattern.permute.xlu0 0
    %580 = vperm.xlu0 %579, %v570
    %v581 = vpop.permute.xlu0 %580
    %584 = vset.pattern.permute.xlu0 0
    %585 = vperm.xlu0 %584, %v571
    %v586 = vpop.permute.xlu0 %585
    %589 = vset.pattern.permute.xlu0 0
    %590 = vperm.xlu0 %589, %v572
    %v591 = vpop.permute.xlu0 %590
    %594 = vset.pattern.permute.xlu0 0
    %595 = vperm.xlu0 %594, %v573
    %v596 = vpop.permute.xlu0 %595
    %599 = vset.pattern.permute.xlu0 0
    %600 = vperm.xlu0 %599, %v574
    %v601 = vpop.permute.xlu0 %600
    %604 = vset.pattern.permute.xlu0 0
    %605 = vperm.xlu0 %604, %v575
    %v606 = vpop.permute.xlu0 %605
    %609 = vset.pattern.permute.xlu0 0
    %610 = vperm.xlu0 %609, %v576
    %v611 = vpop.permute.xlu0 %610
    %614 = vset.pattern.permute.xlu0 0
    %615 = vperm.xlu0 %614, %v577
    %v616 = vpop.permute.xlu0 %615
    %v619 = vsel %vm392, %v562, 0
    %v622 = vsel %vm392, %v563, 0
    %v625 = vsel %vm392, %v564, 0
    %v628 = vsel %vm392, %v565, 0
    %v631 = vsel %vm392, %v566, 0
    %v634 = vsel %vm392, %v567, 0
    %v637 = vsel %vm392, %v568, 0
    %v640 = vsel %vm392, %v569, 0
    %642 = vmatprep.subr.mxu0 0.0
    %643 = vmatpush1.msra.mxu0 %v558
    %644 = vmatprep.subr.mxu0 0.0
    %645 = vmatpush1.msra.mxu0 %v559
    %646 = vmatprep.subr.mxu0 0.0
    %647 = vmatpush1.msra.mxu0 %v560
    %648 = vmatprep.subr.mxu0 0.0
    %649 = vmatpush1.msra.mxu0 %v561
    %650 = vmatprep.subr.mxu0 0.0
    %651 = vmatpush1.msra.mxu0 0.0
    %652 = vmatprep.subr.mxu0 0.0
    %653 = vmatpush1.msra.mxu0 0.0
    %654 = vmatprep.subr.mxu0 0.0
    %655 = vmatpush1.msra.mxu0 0.0
    %656 = vmatprep.subr.mxu0 0.0
    %657 = vmatpush1.msra.mxu0 0.0
    %658 = vmatprep.subr.mxu0 0.0
    %659 = vmatpush1.msra.mxu0 0.0
    %660 = vmatprep.subr.mxu0 0.0
    %661 = vmatpush1.msra.mxu0 0.0
    %662 = vmatprep.subr.mxu0 0.0
    %663 = vmatpush1.msra.mxu0 0.0
    %664 = vmatprep.subr.mxu0 0.0
    %665 = vmatpush1.msra.mxu0 0.0
    %666 = vmatprep.subr.mxu0 0.0
    %667 = vmatpush1.msra.mxu0 0.0
    %668 = vmatprep.subr.mxu0 0.0
    %669 = vmatpush1.msra.mxu0 0.0
    %670 = vmatprep.subr.mxu0 0.0
    %671 = vmatpush1.msra.mxu0 0.0
    %672 = vmatprep.subr.mxu0 0.0
    %673 = vmatpush1.msra.mxu0 0.0
    %674 = vmatprep.subr.mxu0 0.0
    %675 = vmatpush1.msra.mxu0 0.0
    %676 = vmatprep.subr.mxu0 0.0
    %677 = vmatpush1.msra.mxu0 0.0
    %678 = vmatprep.subr.mxu0 0.0
    %679 = vmatpush1.msra.mxu0 0.0
    %680 = vmatprep.subr.mxu0 0.0
    %681 = vmatpush1.msra.mxu0 0.0
    %682 = vmatprep.subr.mxu0 0.0
    %683 = vmatpush1.msra.mxu0 0.0
    %684 = vmatprep.subr.mxu0 0.0
    %685 = vmatpush1.msra.mxu0 0.0
    %686 = vmatprep.subr.mxu0 0.0
    %687 = vmatpush1.msra.mxu0 0.0
    %688 = vmatprep.subr.mxu0 0.0
    %689 = vmatpush1.msra.mxu0 0.0
    %690 = vmatprep.subr.mxu0 0.0
    %691 = vmatpush1.msra.mxu0 0.0
    %692 = vmatprep.subr.mxu0 0.0
    %693 = vmatpush1.msra.mxu0 0.0
    %694 = vmatprep.subr.mxu0 0.0
    %695 = vmatpush1.msra.mxu0 0.0
    %696 = vmatprep.subr.mxu0 0.0
    %697 = vmatpush1.msra.mxu0 0.0
    %698 = vmatprep.subr.mxu0 0.0
    %699 = vmatpush1.msra.mxu0 0.0
    %700 = vmatprep.subr.mxu0 0.0
    %701 = vmatpush1.msra.mxu0 0.0
    %702 = vmatprep.subr.mxu0 0.0
    %703 = vmatpush1.msra.mxu0 0.0
    %704 = vmatprep.subr.mxu0 0.0
    %705 = vmatpush1.msra.mxu0 0.0
    %706 = vmatprep.mubr.f32.mxu0 0.0
    %707 = vmatmul.mubr.f32.gmra.mrb[0].mxu0 %v619
    %v708 = vpop.f32.mrb[0].mxu0
    %v709 = vadd.f32 %v581, %v708
    %v710 = vpop.f32.mrb[0].mxu0
    %711 = vmatprep.mubr.f32.mxu0 0.0
    %712 = vmatmul.mubr.f32.gmra.mrb[0].mxu0 %v622
    %v713 = vpop.f32.mrb[0].mxu0
    %v714 = vadd.f32 %v586, %v713
    %v715 = vpop.f32.mrb[0].mxu0
    %716 = vmatprep.mubr.f32.mxu0 0.0
    %717 = vmatmul.mubr.f32.gmra.mrb[0].mxu0 %v625
    %v718 = vpop.f32.mrb[0].mxu0
    %v719 = vadd.f32 %v591, %v718
    %v720 = vpop.f32.mrb[0].mxu0
    %721 = vmatprep.mubr.f32.mxu0 0.0
    %722 = vmatmul.mubr.f32.gmra.mrb[0].mxu0 %v628
    %v723 = vpop.f32.mrb[0].mxu0
    %v724 = vadd.f32 %v596, %v723
    %v725 = vpop.f32.mrb[0].mxu0
    %726 = vmatprep.mubr.f32.mxu0 0.0
    %727 = vmatmul.mubr.f32.gmra.mrb[0].mxu0 %v631
    %v728 = vpop.f32.mrb[0].mxu0
    %v729 = vadd.f32 %v601, %v728
    %v730 = vpop.f32.mrb[0].mxu0
    %731 = vmatprep.mubr.f32.mxu0 0.0
    %732 = vmatmul.mubr.f32.gmra.mrb[0].mxu0 %v634
    %v733 = vpop.f32.mrb[0].mxu0
    %v734 = vadd.f32 %v606, %v733
    %v735 = vpop.f32.mrb[0].mxu0
    %736 = vmatprep.mubr.f32.mxu0 0.0
    %737 = vmatmul.mubr.f32.gmra.mrb[0].mxu0 %v637
    %v738 = vpop.f32.mrb[0].mxu0
    %v739 = vadd.f32 %v611, %v738
    %v740 = vpop.f32.mrb[0].mxu0
    %741 = vmatprep.mubr.f32.mxu0 0.0
    %742 = vmatmul.mubr.f32.gmra.mrb[0].mxu0 %v640
    %v743 = vpop.f32.mrb[0].mxu0
    %v744 = vadd.f32 %v616, %v743
    %v745 = vpop.f32.mrb[0].mxu0
    %746 = vdwg.mxu0
    %v747 = vmul.f32 %v709, 0.5
    %v748 = vmul.f32 %v714, 0.5
    %v749 = vmul.f32 %v719, 0.5
    %v750 = vmul.f32 %v724, 0.5
    %v751 = vmul.f32 %v729, 0.5
    %v752 = vmul.f32 %v734, 0.5
    %v753 = vmul.f32 %v739, 0.5
    %v754 = vmul.f32 %v744, 0.5
    %v755 = vtanh.pop %v747
    %v756 = vtanh.pop %v748
    %v757 = vtanh.pop %v749
    %v758 = vtanh.pop %v750
    %v759 = vtanh.pop %v751
    %v760 = vtanh.pop %v752
    %v761 = vtanh.pop %v753
    %v762 = vtanh.pop %v754
    %v763 = vadd.f32 %v755, 1.0
    %v764 = vadd.f32 %v756, 1.0
    %v765 = vadd.f32 %v757, 1.0
    %v766 = vadd.f32 %v758, 1.0
    %v767 = vadd.f32 %v759, 1.0
    %v768 = vadd.f32 %v760, 1.0
    %v769 = vadd.f32 %v761, 1.0
    %v770 = vadd.f32 %v762, 1.0
    %v771 = vmul.f32 %v747, %v763
    %v772 = vmul.f32 %v748, %v764
    %v773 = vmul.f32 %v749, %v765
    %v774 = vmul.f32 %v750, %v766
    %v775 = vmul.f32 %v751, %v767
    %v776 = vmul.f32 %v752, %v768
    %v777 = vmul.f32 %v753, %v769
    %v778 = vmul.f32 %v754, %v770
    %v779 = vld [vmem:[%s7] sm:$0x1]
    %v780 = vld [vmem:[#allocation2] sm:$0x1]
    %782 = vset.pattern.permute.xlu0 0
    %783 = vperm.xlu0 %782, %v780
    %v784 = vpop.permute.xlu0 %783
    %v786 = vlaneseq
    %v787 = vshrl.u32 %v786, 7
    %v788 = vsub.s32 0, %v787
    %v789 = vrot.slane %v784, %v788
    %vm790 = vcmask 523264
    %v792 = vsel %vm790, %v779, 0
    %794 = vmatprep.subr.mxu0 0.0
    %795 = vmatpush1.msra.mxu0 %v771
    %796 = vmatprep.subr.mxu0 0.0
    %797 = vmatpush1.msra.mxu0 %v772
    %798 = vmatprep.subr.mxu0 0.0
    %799 = vmatpush1.msra.mxu0 %v773
    %800 = vmatprep.subr.mxu0 0.0
    %801 = vmatpush1.msra.mxu0 %v774
    %802 = vmatprep.subr.mxu0 0.0
    %803 = vmatpush1.msra.mxu0 %v775
    %804 = vmatprep.subr.mxu0 0.0
    %805 = vmatpush1.msra.mxu0 %v776
    %806 = vmatprep.subr.mxu0 0.0
    %807 = vmatpush1.msra.mxu0 %v777
    %808 = vmatprep.subr.mxu0 0.0
    %809 = vmatpush1.msra.mxu0 %v778
    %810 = vmatprep.subr.mxu0 0.0
    %811 = vmatpush1.msra.mxu0 0.0
    %812 = vmatprep.subr.mxu0 0.0
    %813 = vmatpush1.msra.mxu0 0.0
    %814 = vmatprep.subr.mxu0 0.0
    %815 = vmatpush1.msra.mxu0 0.0
    %816 = vmatprep.subr.mxu0 0.0
    %817 = vmatpush1.msra.mxu0 0.0
    %818 = vmatprep.subr.mxu0 0.0
    %819 = vmatpush1.msra.mxu0 0.0
    %820 = vmatprep.subr.mxu0 0.0
    %821 = vmatpush1.msra.mxu0 0.0
    %822 = vmatprep.subr.mxu0 0.0
    %823 = vmatpush1.msra.mxu0 0.0
    %824 = vmatprep.subr.mxu0 0.0
    %825 = vmatpush1.msra.mxu0 0.0
    %826 = vmatprep.subr.mxu0 0.0
    %827 = vmatpush1.msra.mxu0 0.0
    %828 = vmatprep.subr.mxu0 0.0
    %829 = vmatpush1.msra.mxu0 0.0
    %830 = vmatprep.subr.mxu0 0.0
    %831 = vmatpush1.msra.mxu0 0.0
    %832 = vmatprep.subr.mxu0 0.0
    %833 = vmatpush1.msra.mxu0 0.0
    %834 = vmatprep.subr.mxu0 0.0
    %835 = vmatpush1.msra.mxu0 0.0
    %836 = vmatprep.subr.mxu0 0.0
    %837 = vmatpush1.msra.mxu0 0.0
    %838 = vmatprep.subr.mxu0 0.0
    %839 = vmatpush1.msra.mxu0 0.0
    %840 = vmatprep.subr.mxu0 0.0
    %841 = vmatpush1.msra.mxu0 0.0
    %842 = vmatprep.subr.mxu0 0.0
    %843 = vmatpush1.msra.mxu0 0.0
    %844 = vmatprep.subr.mxu0 0.0
    %845 = vmatpush1.msra.mxu0 0.0
    %846 = vmatprep.subr.mxu0 0.0
    %847 = vmatpush1.msra.mxu0 0.0
    %848 = vmatprep.subr.mxu0 0.0
    %849 = vmatpush1.msra.mxu0 0.0
    %850 = vmatprep.subr.mxu0 0.0
    %851 = vmatpush1.msra.mxu0 0.0
    %852 = vmatprep.subr.mxu0 0.0
    %853 = vmatpush1.msra.mxu0 0.0
    %854 = vmatprep.subr.mxu0 0.0
    %855 = vmatpush1.msra.mxu0 0.0
    %856 = vmatprep.subr.mxu0 0.0
    %857 = vmatpush1.msra.mxu0 0.0
    %858 = vmatprep.mubr.f32.mxu0 0.0
    %859 = vmatmul.mubr.f32.gmra.mrb[0].mxu0 %v792
    %v860 = vpop.f32.mrb[0].mxu0
    %v861 = vadd.f32 %v789, %v860
    %v862 = vpop.f32.mrb[0].mxu0
    %863 = vdwg.mxu0
    %s864 = scalar_lea.vmem %s9, %s41
    %v865 = vlaneseq
    %vm866 = vcmp.ge.s32.totalorder %v865, 0
    %vm867 = vcmp.lt.s32.totalorder %v865, 128
    %vm868 = vmand %vm866, %vm867
    %869 = vst.msk [vmem:[%s864] sm:$0x1] %vm868, %v861
  $region42: #{scalar_turbulence_nn.1} parent=0 // loop_footer
    %s39 = sadd.s32 1, %s35
  $region43: #{scalar_turbulence_nn.1} parent=0 // loop_footer_branch
    %34 = sbr.rel target = $region39
  $region44: #{scalar_turbulence_nn.1} parent=0 // loop_exit
    _
  // Predicated region
  $region45: #{scalar_turbulence_nn.1} parent=0 // pred_check
    _
  $region46: #{scalar_turbulence_nn.1} parent=0 // pred_check_branch
    %871 = sbr.rel (0) target = $region48
  $region47: #{scalar_turbulence_nn.1} parent=0 // pred_region
    _
  $region48: #{scalar_turbulence_nn.1} parent=0 // pred_fallthru
    _
  // Predicated region
  $region49: #{scalar_turbulence_nn.1} parent=0 // pred_check
    _
  $region50: #{scalar_turbulence_nn.1} parent=0 // pred_check_branch
    %873 = sbr.rel (0) target = $region52
  $region51: #{scalar_turbulence_nn.1} parent=0 // pred_region
    _
  $region52: #{scalar_turbulence_nn.1} parent=0 // pred_fallthru
    _

</llo_original>
